<compile_context>
chip_gen: v7x
topology: tpu7x:2x2x1
jax: 0.10.0
libtpu: 0.0.40
codegen_flags: <defaults>
</compile_context>

<pallas_src>
import functools
import math

import jax
import jax.numpy as jnp
from jax import lax
from jax.experimental import pallas as pl
from jax.experimental.pallas import tpu as pltpu

NEG_SLOPE = 0.2        # PyG GATConv default negative_slope
MASK_VALUE = -1e30     # finite "minus infinity" for masked logits


def _round_up(a, b):
    return (a + b - 1) // b * b


def _pow2_cap(n):
    """Largest 128 * 2^k that is <= max(n, 128)."""
    v = 128
    while v * 2 <= n:
        v *= 2
    return v


def _vmem_limit_bytes():
    """Generation-aware VMEM budget (v7x: 64 MiB physical, v5e/v6e: 128 MiB)."""
    try:
        cap = int(pltpu.get_tpu_info().vmem_capacity_bytes)
        return max(32 * 1024 * 1024,
                   min(cap - 16 * 1024 * 1024, 100 * 1024 * 1024))
    except Exception:  # pragma: no cover - conservative fallback
        return 48 * 1024 * 1024      # safe on every generation


# ----------------------------------------------------------------------------
# Kernels
# ----------------------------------------------------------------------------
def _proj_kernel(h_ref, w_ref, att_dst_ref, att_src_ref,
                 hw_ref, adst_ref, asrc_ref):
    """Per row-block: hw = h @ W (bf16 out), alpha_dst = hw @ att_dst^T,
    alpha_src = att_src @ hw^T stored as a lane-dense [1, TNp] row."""
    hw = jnp.dot(h_ref[...], w_ref[...], preferred_element_type=jnp.float32)
    hw_ref[...] = hw.astype(jnp.bfloat16)
    adst_ref[...] = lax.dot_general(                              # [TNp, 1]
        hw, att_dst_ref[...], (((1,), (1,)), ((), ())),
        preferred_element_type=jnp.float32)
    asrc_ref[...] = lax.dot_general(                              # [1, TNp]
        att_src_ref[...], hw, (((1,), (1,)), ((), ())),
        preferred_element_type=jnp.float32)


def _attn_kernel(counts_ref, remap_ref,                 # scalar prefetch (SMEM)
                 adst_ref, asrc_ref, hw_ref, adj_ref, bias_ref,
                 out_ref,
                 m_sc, l_sc, acc_sc,
                 *, block_k, hw_resident, relu_out, softmax_out):
    del remap_ref  # consumed only by the index_maps (DMA skipping)
    i = pl.program_id(0)
    k = pl.program_id(1)
    n_k = pl.num_programs(1)

    @pl.when(k == 0)
    def _init():
        m_sc[...] = jnp.full(m_sc.shape, MASK_VALUE, jnp.float32)
        l_sc[...] = jnp.zeros(l_sc.shape, jnp.float32)
        acc_sc[...] = jnp.zeros(acc_sc.shape, jnp.float32)

    # Fully-masked tiles: the remapped index_map already avoided a fresh DMA;
    # skip the compute too.
    @pl.when(counts_ref[i * n_k + k] > 0)
    def _update():
        if hw_resident:
            start = pl.multiple_of(k * block_k, block_k)
            hw_blk = hw_ref[pl.ds(start, block_k), :]             # bf16 [TK,H]
        else:
            hw_blk = hw_ref[...]                                   # bf16 [TK,H]
        edge = adj_ref[...] > 0                                    # [TN, TK]
        s = adst_ref[...] + asrc_ref[...]                          # [TN, TK]
        s = jnp.maximum(s, NEG_SLOPE * s)                          # LeakyReLU
        s = jnp.where(edge, s, MASK_VALUE)

        m_new = jnp.maximum(m_sc[...], jnp.max(s, axis=-1, keepdims=True))
        a = jnp.exp(m_sc[...] - m_new)
        p = jnp.where(edge, jnp.exp(s - m_new), 0.0)   # robust: explicit mask
        l_sc[...] = a * l_sc[...] + jnp.sum(p, axis=-1, keepdims=True)
        acc_sc[...] = a * acc_sc[...] + jnp.dot(
            p.astype(jnp.bfloat16), hw_blk, preferred_element_type=jnp.float32)
        m_sc[...] = m_new

    @pl.when(k == n_k - 1)
    def _finalize():
        l = l_sc[...]
        o = acc_sc[...] / jnp.where(l > 0.0, l, 1.0) + bias_ref[...]
        if relu_out:
            o = jnp.maximum(o, 0.0)
        if softmax_out:
            mx = jnp.max(o, axis=-1, keepdims=True)
            e = jnp.exp(o - mx)
            o = e / jnp.sum(e, axis=-1, keepdims=True)   # exact class probs
        out_ref[...] = o.astype(out_ref.dtype)


# ----------------------------------------------------------------------------
# Layer / model wrappers
# ----------------------------------------------------------------------------
def _gat_layer(h, adj_i8, counts_flat, remap_flat,
               w, att_src, att_dst, bias, *,
               relu_out, softmax_out, block_n, block_k, block_np, vmem_limit):
    n_pad, f_in = h.shape
    h_out = w.shape[1]
    n_r = n_pad // block_n
    n_k = n_pad // block_k
    n_p = n_pad // block_np

    # ---- projection: hw = h @ W (bf16), alpha_dst, alpha_src ----------------
    hw, alpha_dst, alpha_src = pl.pallas_call(
        _proj_kernel,
        out_shape=(jax.ShapeDtypeStruct((n_pad, h_out), jnp.bfloat16),
                   jax.ShapeDtypeStruct((n_pad, 1), jnp.float32),
                   jax.ShapeDtypeStruct((1, n_pad), jnp.float32)),
        grid_spec=pltpu.PrefetchScalarGridSpec(
            num_scalar_prefetch=0,
            grid=(n_p,),
            in_specs=[pl.BlockSpec((block_np, f_in), lambda i: (i, 0)),
                      pl.BlockSpec((f_in, h_out), lambda i: (0, 0)),
                      pl.BlockSpec((1, h_out), lambda i: (0, 0)),
                      pl.BlockSpec((1, h_out), lambda i: (0, 0))],
            out_specs=[pl.BlockSpec((block_np, h_out), lambda i: (i, 0)),
                       pl.BlockSpec((block_np, 1), lambda i: (i, 0)),
                       pl.BlockSpec((1, block_np), lambda i: (0, i))]),
        compiler_params=pltpu.CompilerParams(
            dimension_semantics=("parallel",),
            vmem_limit_bytes=vmem_limit),
    )(h, w, att_dst, att_src)

    # ---- attention: online softmax over adjacency column tiles --------------
    hw_bytes = n_pad * h_out * 2                     # bf16
    hw_resident = (2 * hw_bytes) <= min(vmem_limit // 4, 16 * 1024 * 1024)

    if hw_resident:
        # single DMA; stays in VMEM across the whole grid
        hw_spec = pl.BlockSpec((n_pad, h_out), lambda i, k, cnt, rmp: (0, 0))
    else:
        # stream per column block (bf16), skipping DMA for fully-masked tiles
        hw_spec = pl.BlockSpec((block_k, h_out),
                               lambda i, k, cnt, rmp: (rmp[i * n_k + k], 0))

    out = pl.pallas_call(
        functools.partial(_attn_kernel, block_k=block_k,
                          hw_resident=hw_resident,
                          relu_out=relu_out, softmax_out=softmax_out),
        out_shape=jax.ShapeDtypeStruct((n_pad, h_out), jnp.float32),
        grid_spec=pltpu.PrefetchScalarGridSpec(
            num_scalar_prefetch=2,
            grid=(n_r, n_k),
            in_specs=[
                pl.BlockSpec((block_n, 1), lambda i, k, cnt, rmp: (i, 0)),
                pl.BlockSpec((1, block_k),
                             lambda i, k, cnt, rmp: (0, rmp[i * n_k + k])),
                hw_spec,
                pl.BlockSpec((block_n, block_k),
                             lambda i, k, cnt, rmp: (i, rmp[i * n_k + k])),
                pl.BlockSpec((1, h_out), lambda i, k, cnt, rmp: (0, 0)),
            ],
            out_specs=pl.BlockSpec((block_n, h_out),
                                   lambda i, k, cnt, rmp: (i, 0)),
            scratch_shapes=[pltpu.VMEM((block_n, 1), jnp.float32),
                            pltpu.VMEM((block_n, 1), jnp.float32),
                            pltpu.VMEM((block_n, h_out), jnp.float32)]),
        compiler_params=pltpu.CompilerParams(
            dimension_semantics=("parallel", "arbitrary"),
            vmem_limit_bytes=vmem_limit),
    )(counts_flat, remap_flat, alpha_dst, alpha_src, hw, adj_i8, bias)
    return out


def gat2_forward(x, adj, params, *, block_n=256, block_k=1024, block_np=512):
    """x: [N, F] node features; adj: [N, N] with adj[dst, src] != 0 for an
    edge (self-loops included)."""
    n = x.shape[0]

    # Clamp tile sizes for small graphs and pad N so every tile divides it.
    cap = _pow2_cap(_round_up(n, 128))
    block_n = min(block_n, cap)
    block_k = min(block_k, cap)
    block_np = min(block_np, cap)
    n_pad = _round_up(n, math.lcm(block_n, block_k, block_np))
    assert n_pad % block_n == 0 and n_pad % block_k == 0 and n_pad % block_np == 0

    vmem_limit = _vmem_limit_bytes()

    # Pad features with zeros; pad adjacency with self-loops on the padded
    # diagonal so padded rows keep a nonzero softmax denominator (their
    # outputs are sliced off and real rows never attend to them since the
    # padded columns stay zero).
    x_p = jnp.zeros((n_pad, x.shape[1]), jnp.float32).at[:n, :].set(x)
    adj_p = jnp.zeros((n_pad, n_pad), jnp.float32).at[:n, :n].set(adj)
    pad_idx = jnp.arange(n, n_pad)
    adj_p = adj_p.at[pad_idx, pad_idx].set(1.0)

    edge = adj_p > 0
    adj_i8 = edge.astype(jnp.int8)                    # 0/1 mask, 1 byte/elem

    n_r, n_k = n_pad // block_n, n_pad // block_k
    # per-(row-block, col-block) nonzero count (block-sparse compute skip) and
    # a remapped column-block index so fully-masked tiles re-use the previous
    # nonzero tile's buffer (no DMA issued for them).
    counts = edge.reshape(n_r, block_n, n_k, block_k).sum(
        axis=(1, 3)).astype(jnp.int32)                # [n_r, n_k]
    col = jnp.arange(n_k, dtype=jnp.int32)[None, :]
    remap = jnp.maximum(lax.cummax(jnp.where(counts > 0, col, -1), axis=1), 0)
    counts_flat = counts.reshape(-1)
    remap_flat = remap.reshape(-1).astype(jnp.int32)

    common = dict(block_n=block_n, block_k=block_k, block_np=block_np,
                  vmem_limit=vmem_limit)
    h1 = _gat_layer(x_p, adj_i8, counts_flat, remap_flat,
                    params["w1"], params["att_src1"], params["att_dst1"],
                    params["b1"], relu_out=True, softmax_out=False, **common)
    # TODO(synk): Dropout(p=0.5) omitted — module evaluated in inference mode.
    out = _gat_layer(h1, adj_i8, counts_flat, remap_flat,
                     params["w2"], params["att_src2"], params["att_dst2"],
                     params["b2"], relu_out=False, softmax_out=True, **common)
    # use_skip defaults to False in the reference module, so no skip branch.
    return out[:n]


# ----------------------------------------------------------------------------
# Pure-JAX reference (dense masked softmax), params, graph helpers
# ----------------------------------------------------------------------------
def gat2_reference(x, adj, params):
    def layer(h, w, a_src, a_dst, b):
        hw = h @ w
        logits = (hw @ a_dst.T) + (a_src @ hw.T)          # [N,1] + [1,N]
        logits = jnp.where(logits > 0, logits, NEG_SLOPE * logits)
        logits = jnp.where(adj > 0, logits, MASK_VALUE)
        attn = jax.nn.softmax(logits, axis=-1)
        return attn @ hw + b

    h1 = jax.nn.relu(layer(x, params["w1"], params["att_src1"],
                           params["att_dst1"], params["b1"]))
    h2 = layer(h1, params["w2"], params["att_src2"],
               params["att_dst2"], params["b2"])
    return jax.nn.softmax(h2, axis=-1)


def glorot(key, shape):
    fan_in, fan_out = shape[-2], shape[-1]
    limit = jnp.sqrt(6.0 / (fan_in + fan_out))
    return jax.random.uniform(key, shape, jnp.float32, -limit, limit)


def init_params(key, num_node_features, hidden_channels, out_channels):
    ks = jax.random.split(key, 6)
    return {
        "w1": glorot(ks[0], (num_node_features, hidden_channels)),
        "att_src1": glorot(ks[1], (1, hidden_channels)),
        "att_dst1": glorot(ks[2], (1, hidden_channels)),
        "b1": jnp.zeros((1, hidden_channels), jnp.float32),
        "w2": glorot(ks[3], (hidden_channels, out_channels)),
        "att_src2": glorot(ks[4], (1, out_channels)),
        "att_dst2": glorot(ks[5], (1, out_channels)),
        "b2": jnp.zeros((1, out_channels), jnp.float32),
    }


def build_dense_adj(edge_index, num_nodes):
    """edge_index: [2, E], row 0 = source, row 1 = target (PyG convention).
    Returns adj[N, N] with adj[dst, src] = 1, plus self-loops."""
    src, dst = edge_index[0], edge_index[1]
    adj = jnp.zeros((num_nodes, num_nodes), jnp.float32)
    adj = adj.at[dst, src].set(1.0)
    adj = adj + jnp.eye(num_nodes, dtype=jnp.float32)
    return jnp.minimum(adj, 1.0)


if __name__ == "__main__":
    key = jax.random.PRNGKey(0)
    N = 300                # nodes (pads to 512 -> 2x2 attention grid)
    F_IN = 16              # num_node_features
    HID = 32               # hidden_channels
    C_OUT = 2              # out_channels (licit / illicit)

    k_x, k_e, k_p = jax.random.split(key, 3)

    x = jax.random.normal(k_x, (N, F_IN), jnp.float32)

    # deterministic small graph: a ring + some random edges
    ring_src = jnp.arange(N, dtype=jnp.int32)
    ring_dst = (ring_src + 1) % N
    rand_src = jax.random.randint(jax.random.fold_in(k_e, 0), (4 * N,), 0, N)
    rand_dst = jax.random.randint(jax.random.fold_in(k_e, 1), (4 * N,), 0, N)
    edge_index = jnp.stack([jnp.concatenate([ring_src, rand_src]),
                            jnp.concatenate([ring_dst, rand_dst])], axis=0)
    adj = build_dense_adj(edge_index, N)

    params = init_params(k_p, F_IN, HID, C_OUT)

    out = gat2_forward(x, adj, params)
    out = jax.block_until_ready(out)

    ref = gat2_reference(x, adj, params)

    assert out.shape == (N, C_OUT)
    assert bool(jnp.all(jnp.isfinite(out)))
    # rows of the final softmax must sum to 1 (exact divide used there)
    assert jnp.allclose(jnp.sum(out, axis=-1), 1.0, atol=1e-5)
    # bf16 hw / bf16 p MXU operands introduce small relative noise vs the
    # all-f32 reference
    assert jnp.allclose(out, ref, atol=3e-2, rtol=3e-2)
    print("KERNEL_OK")
</pallas_src>

<mosaic_0001>
module attributes {stable_mosaic.version = 11 : i64} {
  func.func @_proj_kernel(%arg0: i32, %arg1: memref<256x16xf32, #tpu.memory_space<vmem>>, %arg2: memref<16x32xf32, #tpu.memory_space<vmem>>, %arg3: memref<1x32xf32, #tpu.memory_space<vmem>>, %arg4: memref<1x32xf32, #tpu.memory_space<vmem>>, %arg5: memref<256x32xbf16, #tpu.memory_space<vmem>>, %arg6: memref<256x1xf32, #tpu.memory_space<vmem>>, %arg7: memref<1x256xf32, #tpu.memory_space<vmem>>) attributes {dimension_semantics = [#tpu.dimension_semantics<parallel>], iteration_bounds = array<i64: 2>, scalar_prefetch = 0 : i64, scratch_operands = 0 : i64, tpu.core_type = #tpu.core_type<tc>, window_params = [{transform_indices = @transform_0, window_bounds = array<i64: 256, 16>}, {pipeline_mode = #tpu.pipeline_mode<synchronous>, transform_indices = @transform_1, window_bounds = array<i64: 16, 32>}, {pipeline_mode = #tpu.pipeline_mode<synchronous>, transform_indices = @transform_2, window_bounds = array<i64: 1, 32>}, {pipeline_mode = #tpu.pipeline_mode<synchronous>, transform_indices = @transform_3, window_bounds = array<i64: 1, 32>}, {transform_indices = @transform_4, window_bounds = array<i64: 256, 32>}, {transform_indices = @transform_5, window_bounds = array<i64: 256, 1>}, {transform_indices = @transform_6, window_bounds = array<i64: 1, 256>}]} {
    %c0 = arith.constant 0 : index
    %c0_0 = arith.constant 0 : index
    %0 = vector.load %arg1[%c0, %c0_0] : memref<256x16xf32, #tpu.memory_space<vmem>>, vector<256x16xf32>
    %c0_1 = arith.constant 0 : index
    %c0_2 = arith.constant 0 : index
    %1 = vector.load %arg2[%c0_1, %c0_2] : memref<16x32xf32, #tpu.memory_space<vmem>>, vector<16x32xf32>
    %cst = arith.constant dense<0.000000e+00> : vector<256x32xf32>
    %2 = tpu.matmul %0, %1, %cst {dimension_numbers = #tpu.dot_dimension_numbers<[1], [0], [0], [1], [0, 0, 1, 1], [], []>} : vector<256x16xf32>, vector<16x32xf32>, vector<256x32xf32> -> vector<256x32xf32>
    %3 = arith.truncf %2 : vector<256x32xf32> to vector<256x32xbf16>
    %c0_3 = arith.constant 0 : index
    %c0_4 = arith.constant 0 : index
    %4 = vector.load %arg5[%c0_3, %c0_4] : memref<256x32xbf16, #tpu.memory_space<vmem>>, vector<256x32xbf16>
    tpu.vector_store %arg5[%c0_3, %c0_4], %3 {strides = array<i32>} : memref<256x32xbf16, #tpu.memory_space<vmem>>, vector<256x32xbf16>,
    %c0_5 = arith.constant 0 : index
    %c0_6 = arith.constant 0 : index
    %5 = vector.load %arg3[%c0_5, %c0_6] : memref<1x32xf32, #tpu.memory_space<vmem>>, vector<1x32xf32>
    %cst_7 = arith.constant dense<0.000000e+00> : vector<256x1xf32>
    %6 = tpu.matmul %2, %5, %cst_7 {dimension_numbers = #tpu.dot_dimension_numbers<[1], [1], [0], [0], [0, 0, 1, 0], [], []>} : vector<256x32xf32>, vector<1x32xf32>, vector<256x1xf32> -> vector<256x1xf32>
    %c0_8 = arith.constant 0 : index
    %c0_9 = arith.constant 0 : index
    %7 = vector.load %arg6[%c0_8, %c0_9] : memref<256x1xf32, #tpu.memory_space<vmem>>, vector<256x1xf32>
    tpu.vector_store %arg6[%c0_8, %c0_9], %6 {strides = array<i32>} : memref<256x1xf32, #tpu.memory_space<vmem>>, vector<256x1xf32>,
    %c0_10 = arith.constant 0 : index
    %c0_11 = arith.constant 0 : index
    %8 = vector.load %arg4[%c0_10, %c0_11] : memref<1x32xf32, #tpu.memory_space<vmem>>, vector<1x32xf32>
    %cst_12 = arith.constant dense<0.000000e+00> : vector<1x256xf32>
    %9 = tpu.matmul %8, %2, %cst_12 {dimension_numbers = #tpu.dot_dimension_numbers<[1], [1], [0], [0], [0, 0, 1, 0], [], []>} : vector<1x32xf32>, vector<256x32xf32>, vector<1x256xf32> -> vector<1x256xf32>
    %c0_13 = arith.constant 0 : index
    %c0_14 = arith.constant 0 : index
    %10 = vector.load %arg7[%c0_13, %c0_14] : memref<1x256xf32, #tpu.memory_space<vmem>>, vector<1x256xf32>
    tpu.vector_store %arg7[%c0_13, %c0_14], %9 {strides = array<i32>} : memref<1x256xf32, #tpu.memory_space<vmem>>, vector<1x256xf32>,
    return
  }
  func.func @transform_0(%arg0: i32) -> (i32, i32) {
    %c0_i32 = arith.constant 0 : i32
    %c0_i32_0 = arith.constant 0 : i32
    return %arg0, %c0_i32 : i32, i32
  }
  func.func @transform_1(%arg0: i32) -> (i32, i32) {
    %c0_i32 = arith.constant 0 : i32
    %c0_i32_0 = arith.constant 0 : i32
    %c0_i32_1 = arith.constant 0 : i32
    return %c0_i32, %c0_i32_0 : i32, i32
  }
  func.func @transform_2(%arg0: i32) -> (i32, i32) {
    %c0_i32 = arith.constant 0 : i32
    %c0_i32_0 = arith.constant 0 : i32
    %c0_i32_1 = arith.constant 0 : i32
    return %c0_i32, %c0_i32_0 : i32, i32
  }
  func.func @transform_3(%arg0: i32) -> (i32, i32) {
    %c0_i32 = arith.constant 0 : i32
    %c0_i32_0 = arith.constant 0 : i32
    %c0_i32_1 = arith.constant 0 : i32
    return %c0_i32, %c0_i32_0 : i32, i32
  }
  func.func @transform_4(%arg0: i32) -> (i32, i32) {
    %c0_i32 = arith.constant 0 : i32
    %c0_i32_0 = arith.constant 0 : i32
    return %arg0, %c0_i32 : i32, i32
  }
  func.func @transform_5(%arg0: i32) -> (i32, i32) {
    %c0_i32 = arith.constant 0 : i32
    %c0_i32_0 = arith.constant 0 : i32
    return %arg0, %c0_i32 : i32, i32
  }
  func.func @transform_6(%arg0: i32) -> (i32, i32) {
    %c0_i32 = arith.constant 0 : i32
    %c0_i32_0 = arith.constant 0 : i32
    return %c0_i32, %arg0 : i32, i32
  }
}

</mosaic_0001>

<llo_original>
// kernel: tpu_custom_call.1
$region0: #{tpu_custom_call.1}
  #allocation0 [shape = 'u32[]', space=smem, size = 0x4, offset = 0x4, fixed_abs, tag = 'smem constant byte address 0x4 - core index']
  #allocation1 [shape = 'u32[144,128]{1,0:T(1,128)}', space=vmem, size = 0x12000, scoped, tag = 'internal scratch']
  %s0 = inlined_call_operand.vmem [shape: f32[512,16], index: 0, kind: input, shape index: {}]
  %s1 = inlined_call_operand.vmem [shape: f32[16,32], index: 1, kind: input, shape index: {}]
  %s2 = inlined_call_operand.vmem [shape: f32[1,32], index: 2, kind: input, shape index: {}]
  %s3 = inlined_call_operand.vmem [shape: f32[1,32], index: 3, kind: input, shape index: {}]
  %s4 = inlined_call_operand.vmem [shape: bf16[512,32], index: 4, kind: output, shape index: {0}]
  %s5 = inlined_call_operand.vmem [shape: f32[512,1], index: 5, kind: output, shape index: {1}]
  %s6 = inlined_call_operand.hbm [shape: f32[1,512], index: 6, kind: output, shape index: {2}]
  %7 = xla_tuple %s4, %s5, %s6
  %s8 = sld [smem:[#allocation0]]
  $region65: #{tpu_custom_call.1} parent=0
    _
  %s10 = ssub.s32 1, %s8
  %s11 = scalar_select 0, %s10, %s8
  $region1: #{tpu_custom_call.1} parent=0
    #allocation2 [shape = 'u8[2048]{0}', space=vmem, size = 0x800, scoped, tag = 'output window, operand 2']
    #allocation3 [shape = 's32[2]{0}', space=sflag, size = 0x8, scoped, tag = 'scoped memory for tpu_custom_call.1']
    %12 = vsyncpa [#allocation3], 0
    %s13 = scalar_lea.sflag [#allocation3], 1
    %14 = vsyncpa %s13, 0
    loop: start=0, step=1, limit=4
    $region2: #{tpu_custom_call.1} parent=1 // loop_pre_header
      _
    $region3: #{tpu_custom_call.1} parent=1 // loop_header
      %s16 = sphi 0, %s20
      %p17 = scmp.ge.s32.totalorder %s16, 4
      %s26 = sphi 0, %s28
      %s29 = sphi 0, %s26
      %s30 = sphi 0, %s29
      %s46 = sphi 0, %s30
      %s50 = sphi 0, %s50
      %s52 = sphi 0, %s50
      %s53 = sphi 0, %s52
      %s67 = sphi 0, %s53
      %s71 = sphi 0, %s71
      %s73 = sphi 0, %s71
      %s74 = sphi 0, %s73
      %s88 = sphi 0, %s74
      %s92 = sphi 0, %s92
      %s94 = sphi 0, %s92
      %s95 = sphi 0, %s94
      %s109 = sphi 0, %s95
      %s115 = sphi 0, %s117
      %s118 = sphi 0, %s115
      %s119 = sphi 0, %s118
      %s135 = sphi 0, %s119
      %s141 = sphi 0, %s143
      %s144 = sphi 0, %s141
      %s145 = sphi 0, %s144
      %s161 = sphi 0, %s145
      %s167 = sphi 0, %s169
      %s170 = sphi 0, %s167
      %s171 = sphi 0, %s170
      %s187 = sphi 0, %s171
    $region4: #{tpu_custom_call.1} parent=1 // loop_header_branch
      %19 = sbr.rel (%p17) target = $region8
    $region5: #{tpu_custom_call.1} parent=1 // loop_body
      %s21 = ssub.s32 %s16, 1
      %s22 = ssub.s32 %s16, 2
      %s23 = sadd.s32 %s16, 1
      %s24 = ssub.s32 %s16, %s23
      %p25 = scmp.eq.s32.totalorder %s24, 0
      %s27 = sadd.s32 %s26, 1
      %s28 = scalar_select %p25, %s26, %s27
      %p31 = pneg %p25
      %p32 = scmp.eq.s32.totalorder %s16, 1
      %p33 = por %p31, %p32
      %p34 = scmp.ne.s32.totalorder %s26, %s29
      %p35 = scmp.eq.s32.totalorder %s16, 0
      %p36 = por %p34, %p35
      %p37 = scmp.ne.s32.totalorder %s26, %s29
      %p38 = scmp.eq.s32.totalorder %s21, 1
      %p39 = por %p37, %p38
      %p40 = scmp.ne.s32.totalorder %s29, %s30
      %p41 = scmp.eq.s32.totalorder %s21, 0
      %p42 = por %p40, %p41
      %p43 = scmp.ne.s32.totalorder %s29, %s30
      %p44 = scmp.eq.s32.totalorder %s22, 1
      %p45 = por %p43, %p44
      %p47 = scmp.ne.s32.totalorder %s30, %s46
      %p48 = scmp.eq.s32.totalorder %s22, 0
      %p49 = por %p47, %p48
      %s51 = sadd.s32 %s50, 1
      %p54 = scmp.eq.s32.totalorder %s16, 1
      %p55 = scmp.ne.s32.totalorder %s50, %s52
      %p56 = scmp.eq.s32.totalorder %s16, 0
      %p57 = por %p55, %p56
      %p58 = scmp.ne.s32.totalorder %s50, %s52
      %p59 = scmp.eq.s32.totalorder %s21, 1
      %p60 = por %p58, %p59
      %p61 = scmp.ne.s32.totalorder %s52, %s53
      %p62 = scmp.eq.s32.totalorder %s21, 0
      %p63 = por %p61, %p62
      %p64 = scmp.ne.s32.totalorder %s52, %s53
      %p65 = scmp.eq.s32.totalorder %s22, 1
      %p66 = por %p64, %p65
      %p68 = scmp.ne.s32.totalorder %s53, %s67
      %p69 = scmp.eq.s32.totalorder %s22, 0
      %p70 = por %p68, %p69
      %s72 = sadd.s32 %s71, 1
      %p75 = scmp.eq.s32.totalorder %s16, 1
      %p76 = scmp.ne.s32.totalorder %s71, %s73
      %p77 = scmp.eq.s32.totalorder %s16, 0
      %p78 = por %p76, %p77
      %p79 = scmp.ne.s32.totalorder %s71, %s73
      %p80 = scmp.eq.s32.totalorder %s21, 1
      %p81 = por %p79, %p80
      %p82 = scmp.ne.s32.totalorder %s73, %s74
      %p83 = scmp.eq.s32.totalorder %s21, 0
      %p84 = por %p82, %p83
      %p85 = scmp.ne.s32.totalorder %s73, %s74
      %p86 = scmp.eq.s32.totalorder %s22, 1
      %p87 = por %p85, %p86
      %p89 = scmp.ne.s32.totalorder %s74, %s88
      %p90 = scmp.eq.s32.totalorder %s22, 0
      %p91 = por %p89, %p90
      %s93 = sadd.s32 %s92, 1
      %p96 = scmp.eq.s32.totalorder %s16, 1
      %p97 = scmp.ne.s32.totalorder %s92, %s94
      %p98 = scmp.eq.s32.totalorder %s16, 0
      %p99 = por %p97, %p98
      %p100 = scmp.ne.s32.totalorder %s92, %s94
      %p101 = scmp.eq.s32.totalorder %s21, 1
      %p102 = por %p100, %p101
      %p103 = scmp.ne.s32.totalorder %s94, %s95
      %p104 = scmp.eq.s32.totalorder %s21, 0
      %p105 = por %p103, %p104
      %p106 = scmp.ne.s32.totalorder %s94, %s95
      %p107 = scmp.eq.s32.totalorder %s22, 1
      %p108 = por %p106, %p107
      %p110 = scmp.ne.s32.totalorder %s95, %s109
      %p111 = scmp.eq.s32.totalorder %s22, 0
      %p112 = por %p110, %p111
      %s113 = ssub.s32 %s16, %s23
      %p114 = scmp.eq.s32.totalorder %s113, 0
      %s116 = sadd.s32 %s115, 1
      %s117 = scalar_select %p114, %s115, %s116
      %p120 = pneg %p114
      %p121 = scmp.eq.s32.totalorder %s16, 1
      %p122 = por %p120, %p121
      %p123 = scmp.ne.s32.totalorder %s115, %s118
      %p124 = scmp.eq.s32.totalorder %s16, 0
      %p125 = por %p123, %p124
      %p126 = scmp.ne.s32.totalorder %s115, %s118
      %p127 = scmp.eq.s32.totalorder %s21, 1
      %p128 = por %p126, %p127
      %p129 = scmp.ne.s32.totalorder %s118, %s119
      %p130 = scmp.eq.s32.totalorder %s21, 0
      %p131 = por %p129, %p130
      %p132 = scmp.ne.s32.totalorder %s118, %s119
      %p133 = scmp.eq.s32.totalorder %s22, 1
      %p134 = por %p132, %p133
      %p136 = scmp.ne.s32.totalorder %s119, %s135
      %p137 = scmp.eq.s32.totalorder %s22, 0
      %p138 = por %p136, %p137
      %s139 = ssub.s32 %s16, %s23
      %p140 = scmp.eq.s32.totalorder %s139, 0
      %s142 = sadd.s32 %s141, 1
      %s143 = scalar_select %p140, %s141, %s142
      %p146 = pneg %p140
      %p147 = scmp.eq.s32.totalorder %s16, 1
      %p148 = por %p146, %p147
      %p149 = scmp.ne.s32.totalorder %s141, %s144
      %p150 = scmp.eq.s32.totalorder %s16, 0
      %p151 = por %p149, %p150
      %p152 = scmp.ne.s32.totalorder %s141, %s144
      %p153 = scmp.eq.s32.totalorder %s21, 1
      %p154 = por %p152, %p153
      %p155 = scmp.ne.s32.totalorder %s144, %s145
      %p156 = scmp.eq.s32.totalorder %s21, 0
      %p157 = por %p155, %p156
      %p158 = scmp.ne.s32.totalorder %s144, %s145
      %p159 = scmp.eq.s32.totalorder %s22, 1
      %p160 = por %p158, %p159
      %p162 = scmp.ne.s32.totalorder %s145, %s161
      %p163 = scmp.eq.s32.totalorder %s22, 0
      %p164 = por %p162, %p163
      %s165 = ssub.s32 %s16, %s23
      %p166 = scmp.eq.s32.totalorder %s165, 0
      %s168 = sadd.s32 %s167, 1
      %s169 = scalar_select %p166, %s167, %s168
      %p172 = pneg %p166
      %p173 = scmp.eq.s32.totalorder %s16, 1
      %p174 = por %p172, %p173
      %p175 = scmp.ne.s32.totalorder %s167, %s170
      %p176 = scmp.eq.s32.totalorder %s16, 0
      %p177 = por %p175, %p176
      %p178 = scmp.ne.s32.totalorder %s167, %s170
      %p179 = scmp.eq.s32.totalorder %s21, 1
      %p180 = por %p178, %p179
      %p181 = scmp.ne.s32.totalorder %s170, %s171
      %p182 = scmp.eq.s32.totalorder %s21, 0
      %p183 = por %p181, %p182
      %p184 = scmp.ne.s32.totalorder %s170, %s171
      %p185 = scmp.eq.s32.totalorder %s22, 1
      %p186 = por %p184, %p185
      %p188 = scmp.ne.s32.totalorder %s171, %s187
      %p189 = scmp.eq.s32.totalorder %s22, 0
      %p190 = por %p188, %p189
      %p191 = scmp.le.s32.totalorder 1, %s16
      %p192 = scmp.lt.s32.totalorder %s16, 3
      %p193 = pnand %p191, %p192
      %p194 = pneg %p193
      // Predicated region
      $region9: #{tpu_custom_call.1} parent=5 // pred_check
        _
      $region10: #{tpu_custom_call.1} parent=5 // pred_check_branch
        %196 = sbr.rel (%p193) target = $region12
      $region11: #{tpu_custom_call.1} parent=5 // pred_region
        %s197 = ssub.s32 %s16, 1
        // Predicated region
        $region13: #{tpu_custom_call.1} parent=11 // pred_check
          %p198 = pneg %p63
        $region14: #{tpu_custom_call.1} parent=11 // pred_check_branch
          %200 = sbr.rel (%p198) target = $region16
        $region15: #{tpu_custom_call.1} parent=11 // pred_region
          _
        $region16: #{tpu_custom_call.1} parent=11 // pred_fallthru
          _
        // Predicated region
        $region17: #{tpu_custom_call.1} parent=11 // pred_check
          %p201 = pneg %p84
        $region18: #{tpu_custom_call.1} parent=11 // pred_check_branch
          %203 = sbr.rel (%p201) target = $region20
        $region19: #{tpu_custom_call.1} parent=11 // pred_region
          _
        $region20: #{tpu_custom_call.1} parent=11 // pred_fallthru
          _
        // Predicated region
        $region21: #{tpu_custom_call.1} parent=11 // pred_check
          %p204 = pneg %p105
        $region22: #{tpu_custom_call.1} parent=11 // pred_check_branch
          %206 = sbr.rel (%p204) target = $region24
        $region23: #{tpu_custom_call.1} parent=11 // pred_region
          _
        $region24: #{tpu_custom_call.1} parent=11 // pred_fallthru
          _
      $region12: #{tpu_custom_call.1} parent=5 // pred_fallthru
        _
      %p207 = scmp.lt.s32.totalorder %s16, 2
      // Predicated region
      $region25: #{tpu_custom_call.1} parent=5 // pred_check
        %p208 = pneg %p207
      $region26: #{tpu_custom_call.1} parent=5 // pred_check_branch
        %210 = sbr.rel (%p208) target = $region28
      $region27: #{tpu_custom_call.1} parent=5 // pred_region
        // Predicated region
        $region29: #{tpu_custom_call.1} parent=27 // pred_check
          %p211 = pneg %p36
        $region30: #{tpu_custom_call.1} parent=27 // pred_check_branch
          %213 = sbr.rel (%p211) target = $region32
        $region31: #{tpu_custom_call.1} parent=27 // pred_region
          %s214 = smul.u32 32, %s16
          %p215 = scmp.lt.s32.totalorder %s214, 63
          %s216 = scalar_select %p215, %s214, 63
          %s217 = smul.addr %s216, 8
          %s218 = scalar_lea.vmem %s0, %s217
          %s219 = smul.u32 32, %s16
        $region32: #{tpu_custom_call.1} parent=27 // pred_fallthru
          _
      $region28: #{tpu_custom_call.1} parent=5 // pred_fallthru
        _
      %p220 = scmp.le.s32.totalorder 1, %s16
      %p221 = scmp.lt.s32.totalorder %s16, 3
      %p222 = pnand %p220, %p221
      %p223 = pneg %p222
      // Predicated region
      $region33: #{tpu_custom_call.1} parent=5 // pred_check
        _
      $region34: #{tpu_custom_call.1} parent=5 // pred_check_branch
        %225 = sbr.rel (%p222) target = $region36
      $region35: #{tpu_custom_call.1} parent=5 // pred_region
        %s226 = ssub.s32 %s16, 1
        %s227 = smul.u32 32, %s21
        %p228 = scmp.lt.s32.totalorder %s227, 63
        %s229 = scalar_select %p228, %s227, 63
        %s230 = smul.addr %s229, 8
        %s231 = scalar_lea.vmem %s0, %s230
        %p232 = pneg %p42
        %p233 = pneg %p39
        %p234 = pneg %p63
        %p235 = pneg %p60
        %p236 = pneg %p84
        %p237 = pneg %p81
        %p238 = pneg %p105
        %p239 = pneg %p102
        %p240 = pneg %p131
        %p241 = pneg %p128
        %s242 = smul.u32 32, %s21
        %p243 = scmp.lt.s32.totalorder %s242, 63
        %s244 = scalar_select %p243, %s242, 63
        %s245 = smul.addr %s244, 4
        %s246 = scalar_lea.vmem %s4, %s245
        %p247 = pneg %p157
        %p248 = pneg %p154
        %s249 = smul.u32 32, %s21
        %p250 = scmp.lt.s32.totalorder %s249, 63
        %s251 = scalar_select %p250, %s249, 63
        %s252 = smul.addr %s251, 8
        %s253 = scalar_lea.vmem %s5, %s252
        %p254 = pneg %p183
        %p255 = pneg %p180
        %s256 = sand.u32 %s170, 1
        %s257 = scalar_lea.sflag [#allocation3], %s256
        %s258 = sand.u32 %s170, 1
        %s259 = smul.addr %s258, 2
        %s260 = scalar_lea.vmem [#allocation2], %s259
        %s261 = smul.u32 32, %s21
        %p262 = scmp.lt.s32.totalorder %s261, 63
        %s263 = scalar_select %p262, %s261, 63
        %s264 = smul.addr %s263, 8
        %s265 = scalar_lea.vmem %s0, %s264
        %s266 = smul.u32 32, %s21
        %s267 = smul.u32 32, %s21
        %p268 = scmp.lt.s32.totalorder %s267, 63
        %s269 = scalar_select %p268, %s267, 63
        %s270 = smul.addr %s269, 4
        %s271 = scalar_lea.vmem %s4, %s270
        %s272 = smul.u32 32, %s21
        %s273 = smul.u32 32, %s21
        %p274 = scmp.lt.s32.totalorder %s273, 63
        %s275 = scalar_select %p274, %s273, 63
        %s276 = smul.addr %s275, 8
        %s277 = scalar_lea.vmem %s5, %s276
        %s278 = smul.u32 32, %s21
        %s279 = smul.u32 2, %s21
        %v280 = vld [vmem:[%s265] sm:$0xff]
        %v281 = vld [vmem:[%s265 + $0x8] sm:$0xff]
        %v282 = vld [vmem:[%s265 + $0x10] sm:$0xff]
        %v283 = vld [vmem:[%s265 + $0x18] sm:$0xff]
        %v284 = vld [vmem:[%s265 + $0x20] sm:$0xff]
        %v285 = vld [vmem:[%s265 + $0x28] sm:$0xff]
        %v286 = vld [vmem:[%s265 + $0x30] sm:$0xff]
        %v287 = vld [vmem:[%s265 + $0x38] sm:$0xff]
        %v288 = vld [vmem:[%s265 + $0x40] sm:$0xff]
        %v289 = vld [vmem:[%s265 + $0x48] sm:$0xff]
        %v290 = vld [vmem:[%s265 + $0x50] sm:$0xff]
        %v291 = vld [vmem:[%s265 + $0x58] sm:$0xff]
        %v292 = vld [vmem:[%s265 + $0x60] sm:$0xff]
        %v293 = vld [vmem:[%s265 + $0x68] sm:$0xff]
        %v294 = vld [vmem:[%s265 + $0x70] sm:$0xff]
        %v295 = vld [vmem:[%s265 + $0x78] sm:$0xff]
        %v296 = vld [vmem:[%s265 + $0x80] sm:$0xff]
        %v297 = vld [vmem:[%s265 + $0x88] sm:$0xff]
        %v298 = vld [vmem:[%s265 + $0x90] sm:$0xff]
        %v299 = vld [vmem:[%s265 + $0x98] sm:$0xff]
        %v300 = vld [vmem:[%s265 + $0xa0] sm:$0xff]
        %v301 = vld [vmem:[%s265 + $0xa8] sm:$0xff]
        %v302 = vld [vmem:[%s265 + $0xb0] sm:$0xff]
        %v303 = vld [vmem:[%s265 + $0xb8] sm:$0xff]
        %v304 = vld [vmem:[%s265 + $0xc0] sm:$0xff]
        %v305 = vld [vmem:[%s265 + $0xc8] sm:$0xff]
        %v306 = vld [vmem:[%s265 + $0xd0] sm:$0xff]
        %v307 = vld [vmem:[%s265 + $0xd8] sm:$0xff]
        %v308 = vld [vmem:[%s265 + $0xe0] sm:$0xff]
        %v309 = vld [vmem:[%s265 + $0xe8] sm:$0xff]
        %v310 = vld [vmem:[%s265 + $0xf0] sm:$0xff]
        %v311 = vld [vmem:[%s265 + $0xf8] sm:$0xff]
        %v312 = vld [vmem:[%s1] sm:$0xff]
        %v313 = vld [vmem:[%s1 + $0x8] sm:$0xff]
        %vm314 = vcmask 130048
        %v316 = vsel %vm314, %v280, 0
        %v319 = vsel %vm314, %v281, 0
        %v322 = vsel %vm314, %v282, 0
        %v325 = vsel %vm314, %v283, 0
        %v328 = vsel %vm314, %v284, 0
        %v331 = vsel %vm314, %v285, 0
        %v334 = vsel %vm314, %v286, 0
        %v337 = vsel %vm314, %v287, 0
        %v340 = vsel %vm314, %v288, 0
        %v343 = vsel %vm314, %v289, 0
        %v346 = vsel %vm314, %v290, 0
        %v349 = vsel %vm314, %v291, 0
        %v352 = vsel %vm314, %v292, 0
        %v355 = vsel %vm314, %v293, 0
        %v358 = vsel %vm314, %v294, 0
        %v361 = vsel %vm314, %v295, 0
        %v364 = vsel %vm314, %v296, 0
        %v367 = vsel %vm314, %v297, 0
        %v370 = vsel %vm314, %v298, 0
        %v373 = vsel %vm314, %v299, 0
        %v376 = vsel %vm314, %v300, 0
        %v379 = vsel %vm314, %v301, 0
        %v382 = vsel %vm314, %v302, 0
        %v385 = vsel %vm314, %v303, 0
        %v388 = vsel %vm314, %v304, 0
        %v391 = vsel %vm314, %v305, 0
        %v394 = vsel %vm314, %v306, 0
        %v397 = vsel %vm314, %v307, 0
        %v400 = vsel %vm314, %v308, 0
        %v403 = vsel %vm314, %v309, 0
        %v406 = vsel %vm314, %v310, 0
        %v409 = vsel %vm314, %v311, 0
        %411 = vmatprep.subr.mxu0 0.0
        %412 = vmatpush1.msra.mxu0 %v312
        %413 = vmatprep.subr.mxu0 0.0
        %414 = vmatpush1.msra.mxu0 %v313
        %415 = vmatprep.subr.mxu0 0.0
        %416 = vmatpush1.msra.mxu0 0.0
        %417 = vmatprep.subr.mxu0 0.0
        %418 = vmatpush1.msra.mxu0 0.0
        %419 = vmatprep.subr.mxu0 0.0
        %420 = vmatpush1.msra.mxu0 0.0
        %421 = vmatprep.subr.mxu0 0.0
        %422 = vmatpush1.msra.mxu0 0.0
        %423 = vmatprep.subr.mxu0 0.0
        %424 = vmatpush1.msra.mxu0 0.0
        %425 = vmatprep.subr.mxu0 0.0
        %426 = vmatpush1.msra.mxu0 0.0
        %427 = vmatprep.subr.mxu0 0.0
        %428 = vmatpush1.msra.mxu0 0.0
        %429 = vmatprep.subr.mxu0 0.0
        %430 = vmatpush1.msra.mxu0 0.0
        %431 = vmatprep.subr.mxu0 0.0
        %432 = vmatpush1.msra.mxu0 0.0
        %433 = vmatprep.subr.mxu0 0.0
        %434 = vmatpush1.msra.mxu0 0.0
        %435 = vmatprep.subr.mxu0 0.0
        %436 = vmatpush1.msra.mxu0 0.0
        %437 = vmatprep.subr.mxu0 0.0
        %438 = vmatpush1.msra.mxu0 0.0
        %439 = vmatprep.subr.mxu0 0.0
        %440 = vmatpush1.msra.mxu0 0.0
        %441 = vmatprep.subr.mxu0 0.0
        %442 = vmatpush1.msra.mxu0 0.0
        %443 = vmatprep.subr.mxu0 0.0
        %444 = vmatpush1.msra.mxu0 0.0
        %445 = vmatprep.subr.mxu0 0.0
        %446 = vmatpush1.msra.mxu0 0.0
        %447 = vmatprep.subr.mxu0 0.0
        %448 = vmatpush1.msra.mxu0 0.0
        %449 = vmatprep.subr.mxu0 0.0
        %450 = vmatpush1.msra.mxu0 0.0
        %451 = vmatprep.subr.mxu0 0.0
        %452 = vmatpush1.msra.mxu0 0.0
        %453 = vmatprep.subr.mxu0 0.0
        %454 = vmatpush1.msra.mxu0 0.0
        %455 = vmatprep.subr.mxu0 0.0
        %456 = vmatpush1.msra.mxu0 0.0
        %457 = vmatprep.subr.mxu0 0.0
        %458 = vmatpush1.msra.mxu0 0.0
        %459 = vmatprep.subr.mxu0 0.0
        %460 = vmatpush1.msra.mxu0 0.0
        %461 = vmatprep.subr.mxu0 0.0
        %462 = vmatpush1.msra.mxu0 0.0
        %463 = vmatprep.subr.mxu0 0.0
        %464 = vmatpush1.msra.mxu0 0.0
        %465 = vmatprep.subr.mxu0 0.0
        %466 = vmatpush1.msra.mxu0 0.0
        %467 = vmatprep.subr.mxu0 0.0
        %468 = vmatpush1.msra.mxu0 0.0
        %469 = vmatprep.subr.mxu0 0.0
        %470 = vmatpush1.msra.mxu0 0.0
        %471 = vmatprep.subr.mxu0 0.0
        %472 = vmatpush1.msra.mxu0 0.0
        %473 = vmatprep.subr.mxu0 0.0
        %474 = vmatpush1.msra.mxu0 0.0
        %475 = vmatprep.mubr.f32.mxu0 0.0
        %476 = vmatmul.mubr.f32.gmra.mrb[0].mxu0 %v316
        %v477 = vpop.f32.mrb[0].mxu0
        %v478 = vadd.f32 0.0, %v477
        %v479 = vpop.f32.mrb[0].mxu0
        %480 = vmatprep.mubr.f32.mxu0 0.0
        %481 = vmatmul.mubr.f32.gmra.mrb[0].mxu0 %v319
        %v482 = vpop.f32.mrb[0].mxu0
        %v483 = vadd.f32 0.0, %v482
        %v484 = vpop.f32.mrb[0].mxu0
        %485 = vmatprep.mubr.f32.mxu0 0.0
        %486 = vmatmul.mubr.f32.gmra.mrb[0].mxu0 %v322
        %v487 = vpop.f32.mrb[0].mxu0
        %v488 = vadd.f32 0.0, %v487
        %v489 = vpop.f32.mrb[0].mxu0
        %490 = vmatprep.mubr.f32.mxu0 0.0
        %491 = vmatmul.mubr.f32.gmra.mrb[0].mxu0 %v325
        %v492 = vpop.f32.mrb[0].mxu0
        %v493 = vadd.f32 0.0, %v492
        %v494 = vpop.f32.mrb[0].mxu0
        %495 = vmatprep.mubr.f32.mxu0 0.0
        %496 = vmatmul.mubr.f32.gmra.mrb[0].mxu0 %v328
        %v497 = vpop.f32.mrb[0].mxu0
        %v498 = vadd.f32 0.0, %v497
        %v499 = vpop.f32.mrb[0].mxu0
        %500 = vmatprep.mubr.f32.mxu0 0.0
        %501 = vmatmul.mubr.f32.gmra.mrb[0].mxu0 %v331
        %v502 = vpop.f32.mrb[0].mxu0
        %v503 = vadd.f32 0.0, %v502
        %v504 = vpop.f32.mrb[0].mxu0
        %505 = vmatprep.mubr.f32.mxu0 0.0
        %506 = vmatmul.mubr.f32.gmra.mrb[0].mxu0 %v334
        %v507 = vpop.f32.mrb[0].mxu0
        %v508 = vadd.f32 0.0, %v507
        %v509 = vpop.f32.mrb[0].mxu0
        %510 = vmatprep.mubr.f32.mxu0 0.0
        %511 = vmatmul.mubr.f32.gmra.mrb[0].mxu0 %v337
        %v512 = vpop.f32.mrb[0].mxu0
        %v513 = vadd.f32 0.0, %v512
        %v514 = vpop.f32.mrb[0].mxu0
        %515 = vmatprep.mubr.f32.mxu0 0.0
        %516 = vmatmul.mubr.f32.gmra.mrb[0].mxu0 %v340
        %v517 = vpop.f32.mrb[0].mxu0
        %v518 = vadd.f32 0.0, %v517
        %v519 = vpop.f32.mrb[0].mxu0
        %520 = vmatprep.mubr.f32.mxu0 0.0
        %521 = vmatmul.mubr.f32.gmra.mrb[0].mxu0 %v343
        %v522 = vpop.f32.mrb[0].mxu0
        %v523 = vadd.f32 0.0, %v522
        %v524 = vpop.f32.mrb[0].mxu0
        %525 = vmatprep.mubr.f32.mxu0 0.0
        %526 = vmatmul.mubr.f32.gmra.mrb[0].mxu0 %v346
        %v527 = vpop.f32.mrb[0].mxu0
        %v528 = vadd.f32 0.0, %v527
        %v529 = vpop.f32.mrb[0].mxu0
        %530 = vmatprep.mubr.f32.mxu0 0.0
        %531 = vmatmul.mubr.f32.gmra.mrb[0].mxu0 %v349
        %v532 = vpop.f32.mrb[0].mxu0
        %v533 = vadd.f32 0.0, %v532
        %v534 = vpop.f32.mrb[0].mxu0
        %535 = vmatprep.mubr.f32.mxu0 0.0
        %536 = vmatmul.mubr.f32.gmra.mrb[0].mxu0 %v352
        %v537 = vpop.f32.mrb[0].mxu0
        %v538 = vadd.f32 0.0, %v537
        %v539 = vpop.f32.mrb[0].mxu0
        %540 = vmatprep.mubr.f32.mxu0 0.0
        %541 = vmatmul.mubr.f32.gmra.mrb[0].mxu0 %v355
        %v542 = vpop.f32.mrb[0].mxu0
        %v543 = vadd.f32 0.0, %v542
        %v544 = vpop.f32.mrb[0].mxu0
        %545 = vmatprep.mubr.f32.mxu0 0.0
        %546 = vmatmul.mubr.f32.gmra.mrb[0].mxu0 %v358
        %v547 = vpop.f32.mrb[0].mxu0
        %v548 = vadd.f32 0.0, %v547
        %v549 = vpop.f32.mrb[0].mxu0
        %550 = vmatprep.mubr.f32.mxu0 0.0
        %551 = vmatmul.mubr.f32.gmra.mrb[0].mxu0 %v361
        %v552 = vpop.f32.mrb[0].mxu0
        %v553 = vadd.f32 0.0, %v552
        %v554 = vpop.f32.mrb[0].mxu0
        %555 = vmatprep.mubr.f32.mxu0 0.0
        %556 = vmatmul.mubr.f32.gmra.mrb[0].mxu0 %v364
        %v557 = vpop.f32.mrb[0].mxu0
        %v558 = vadd.f32 0.0, %v557
        %v559 = vpop.f32.mrb[0].mxu0
        %560 = vmatprep.mubr.f32.mxu0 0.0
        %561 = vmatmul.mubr.f32.gmra.mrb[0].mxu0 %v367
        %v562 = vpop.f32.mrb[0].mxu0
        %v563 = vadd.f32 0.0, %v562
        %v564 = vpop.f32.mrb[0].mxu0
        %565 = vmatprep.mubr.f32.mxu0 0.0
        %566 = vmatmul.mubr.f32.gmra.mrb[0].mxu0 %v370
        %v567 = vpop.f32.mrb[0].mxu0
        %v568 = vadd.f32 0.0, %v567
        %v569 = vpop.f32.mrb[0].mxu0
        %570 = vmatprep.mubr.f32.mxu0 0.0
        %571 = vmatmul.mubr.f32.gmra.mrb[0].mxu0 %v373
        %v572 = vpop.f32.mrb[0].mxu0
        %v573 = vadd.f32 0.0, %v572
        %v574 = vpop.f32.mrb[0].mxu0
        %575 = vmatprep.mubr.f32.mxu0 0.0
        %576 = vmatmul.mubr.f32.gmra.mrb[0].mxu0 %v376
        %v577 = vpop.f32.mrb[0].mxu0
        %v578 = vadd.f32 0.0, %v577
        %v579 = vpop.f32.mrb[0].mxu0
        %580 = vmatprep.mubr.f32.mxu0 0.0
        %581 = vmatmul.mubr.f32.gmra.mrb[0].mxu0 %v379
        %v582 = vpop.f32.mrb[0].mxu0
        %v583 = vadd.f32 0.0, %v582
        %v584 = vpop.f32.mrb[0].mxu0
        %585 = vmatprep.mubr.f32.mxu0 0.0
        %586 = vmatmul.mubr.f32.gmra.mrb[0].mxu0 %v382
        %v587 = vpop.f32.mrb[0].mxu0
        %v588 = vadd.f32 0.0, %v587
        %v589 = vpop.f32.mrb[0].mxu0
        %590 = vmatprep.mubr.f32.mxu0 0.0
        %591 = vmatmul.mubr.f32.gmra.mrb[0].mxu0 %v385
        %v592 = vpop.f32.mrb[0].mxu0
        %v593 = vadd.f32 0.0, %v592
        %v594 = vpop.f32.mrb[0].mxu0
        %595 = vmatprep.mubr.f32.mxu0 0.0
        %596 = vmatmul.mubr.f32.gmra.mrb[0].mxu0 %v388
        %v597 = vpop.f32.mrb[0].mxu0
        %v598 = vadd.f32 0.0, %v597
        %v599 = vpop.f32.mrb[0].mxu0
        %600 = vmatprep.mubr.f32.mxu0 0.0
        %601 = vmatmul.mubr.f32.gmra.mrb[0].mxu0 %v391
        %v602 = vpop.f32.mrb[0].mxu0
        %v603 = vadd.f32 0.0, %v602
        %v604 = vpop.f32.mrb[0].mxu0
        %605 = vmatprep.mubr.f32.mxu0 0.0
        %606 = vmatmul.mubr.f32.gmra.mrb[0].mxu0 %v394
        %v607 = vpop.f32.mrb[0].mxu0
        %v608 = vadd.f32 0.0, %v607
        %v609 = vpop.f32.mrb[0].mxu0
        %610 = vmatprep.mubr.f32.mxu0 0.0
        %611 = vmatmul.mubr.f32.gmra.mrb[0].mxu0 %v397
        %v612 = vpop.f32.mrb[0].mxu0
        %v613 = vadd.f32 0.0, %v612
        %v614 = vpop.f32.mrb[0].mxu0
        %615 = vmatprep.mubr.f32.mxu0 0.0
        %616 = vmatmul.mubr.f32.gmra.mrb[0].mxu0 %v400
        %v617 = vpop.f32.mrb[0].mxu0
        %v618 = vadd.f32 0.0, %v617
        %v619 = vpop.f32.mrb[0].mxu0
        %620 = vmatprep.mubr.f32.mxu0 0.0
        %621 = vmatmul.mubr.f32.gmra.mrb[0].mxu0 %v403
        %v622 = vpop.f32.mrb[0].mxu0
        %v623 = vadd.f32 0.0, %v622
        %v624 = vpop.f32.mrb[0].mxu0
        %625 = vmatprep.mubr.f32.mxu0 0.0
        %626 = vmatmul.mubr.f32.gmra.mrb[0].mxu0 %v406
        %v627 = vpop.f32.mrb[0].mxu0
        %v628 = vadd.f32 0.0, %v627
        %v629 = vpop.f32.mrb[0].mxu0
        %630 = vmatprep.mubr.f32.mxu0 0.0
        %631 = vmatmul.mubr.f32.gmra.mrb[0].mxu0 %v409
        %v632 = vpop.f32.mrb[0].mxu0
        %v633 = vadd.f32 0.0, %v632
        %v634 = vpop.f32.mrb[0].mxu0
        %635 = vdwg.mxu0
        %v636 = vpack.c.bf16 %v483, %v478
        %v637 = vpack.c.bf16 %v493, %v488
        %v638 = vpack.c.bf16 %v503, %v498
        %v639 = vpack.c.bf16 %v513, %v508
        %v640 = vpack.c.bf16 %v523, %v518
        %v641 = vpack.c.bf16 %v533, %v528
        %v642 = vpack.c.bf16 %v543, %v538
        %v643 = vpack.c.bf16 %v553, %v548
        %v644 = vpack.c.bf16 %v563, %v558
        %v645 = vpack.c.bf16 %v573, %v568
        %v646 = vpack.c.bf16 %v583, %v578
        %v647 = vpack.c.bf16 %v593, %v588
        %v648 = vpack.c.bf16 %v603, %v598
        %v649 = vpack.c.bf16 %v613, %v608
        %v650 = vpack.c.bf16 %v623, %v618
        %v651 = vpack.c.bf16 %v633, %v628
        %v668 = vunpack.c.l.b16 %v636
        %v669 = vunpack.c.h.b16 %v636
        %v670 = vunpack.c.l.b16 %v637
        %v671 = vunpack.c.h.b16 %v637
        %v672 = vunpack.c.l.b16 %v638
        %v673 = vunpack.c.h.b16 %v638
        %v674 = vunpack.c.l.b16 %v639
        %v675 = vunpack.c.h.b16 %v639
        %v676 = vunpack.c.l.b16 %v640
        %v677 = vunpack.c.h.b16 %v640
        %v678 = vunpack.c.l.b16 %v641
        %v679 = vunpack.c.h.b16 %v641
        %v680 = vunpack.c.l.b16 %v642
        %v681 = vunpack.c.h.b16 %v642
        %v682 = vunpack.c.l.b16 %v643
        %v683 = vunpack.c.h.b16 %v643
        %v684 = vunpack.c.l.b16 %v644
        %v685 = vunpack.c.h.b16 %v644
        %v686 = vunpack.c.l.b16 %v645
        %v687 = vunpack.c.h.b16 %v645
        %v688 = vunpack.c.l.b16 %v646
        %v689 = vunpack.c.h.b16 %v646
        %v690 = vunpack.c.l.b16 %v647
        %v691 = vunpack.c.h.b16 %v647
        %v692 = vunpack.c.l.b16 %v648
        %v693 = vunpack.c.h.b16 %v648
        %v694 = vunpack.c.l.b16 %v649
        %v695 = vunpack.c.h.b16 %v649
        %v696 = vunpack.c.l.b16 %v650
        %v697 = vunpack.c.h.b16 %v650
        %v698 = vunpack.c.l.b16 %v651
        %v699 = vunpack.c.h.b16 %v651
        %v700 = vpack.c.b16 %v668, %v668
        %v701 = vpack.c.b16 %v669, %v669
        %v702 = vpack.c.b16 %v670, %v670
        %v703 = vpack.c.b16 %v671, %v671
        %v704 = vpack.c.b16 %v672, %v672
        %v705 = vpack.c.b16 %v673, %v673
        %v706 = vpack.c.b16 %v674, %v674
        %v707 = vpack.c.b16 %v675, %v675
        %v708 = vpack.c.b16 %v676, %v676
        %v709 = vpack.c.b16 %v677, %v677
        %v710 = vpack.c.b16 %v678, %v678
        %v711 = vpack.c.b16 %v679, %v679
        %v712 = vpack.c.b16 %v680, %v680
        %v713 = vpack.c.b16 %v681, %v681
        %v714 = vpack.c.b16 %v682, %v682
        %v715 = vpack.c.b16 %v683, %v683
        %v716 = vpack.c.b16 %v684, %v684
        %v717 = vpack.c.b16 %v685, %v685
        %v718 = vpack.c.b16 %v686, %v686
        %v719 = vpack.c.b16 %v687, %v687
        %v720 = vpack.c.b16 %v688, %v688
        %v721 = vpack.c.b16 %v689, %v689
        %v722 = vpack.c.b16 %v690, %v690
        %v723 = vpack.c.b16 %v691, %v691
        %v724 = vpack.c.b16 %v692, %v692
        %v725 = vpack.c.b16 %v693, %v693
        %v726 = vpack.c.b16 %v694, %v694
        %v727 = vpack.c.b16 %v695, %v695
        %v728 = vpack.c.b16 %v696, %v696
        %v729 = vpack.c.b16 %v697, %v697
        %v730 = vpack.c.b16 %v698, %v698
        %v731 = vpack.c.b16 %v699, %v699
        %vm764 = vcmask 257024
        %765 = vst.msk [vmem:[%s271] sm:$0xf] %vm764, %v700
        %766 = vst.msk [vmem:[%s271 + $0x4] sm:$0xf] %vm764, %v701
        %767 = vst.msk [vmem:[%s271 + $0x8] sm:$0xf] %vm764, %v702
        %768 = vst.msk [vmem:[%s271 + $0xc] sm:$0xf] %vm764, %v703
        %769 = vst.msk [vmem:[%s271 + $0x10] sm:$0xf] %vm764, %v704
        %770 = vst.msk [vmem:[%s271 + $0x14] sm:$0xf] %vm764, %v705
        %771 = vst.msk [vmem:[%s271 + $0x18] sm:$0xf] %vm764, %v706
        %772 = vst.msk [vmem:[%s271 + $0x1c] sm:$0xf] %vm764, %v707
        %773 = vst.msk [vmem:[%s271 + $0x20] sm:$0xf] %vm764, %v708
        %774 = vst.msk [vmem:[%s271 + $0x24] sm:$0xf] %vm764, %v709
        %775 = vst.msk [vmem:[%s271 + $0x28] sm:$0xf] %vm764, %v710
        %776 = vst.msk [vmem:[%s271 + $0x2c] sm:$0xf] %vm764, %v711
        %777 = vst.msk [vmem:[%s271 + $0x30] sm:$0xf] %vm764, %v712
        %778 = vst.msk [vmem:[%s271 + $0x34] sm:$0xf] %vm764, %v713
        %779 = vst.msk [vmem:[%s271 + $0x38] sm:$0xf] %vm764, %v714
        %780 = vst.msk [vmem:[%s271 + $0x3c] sm:$0xf] %vm764, %v715
        %781 = vst.msk [vmem:[%s271 + $0x40] sm:$0xf] %vm764, %v716
        %782 = vst.msk [vmem:[%s271 + $0x44] sm:$0xf] %vm764, %v717
        %783 = vst.msk [vmem:[%s271 + $0x48] sm:$0xf] %vm764, %v718
        %784 = vst.msk [vmem:[%s271 + $0x4c] sm:$0xf] %vm764, %v719
        %785 = vst.msk [vmem:[%s271 + $0x50] sm:$0xf] %vm764, %v720
        %786 = vst.msk [vmem:[%s271 + $0x54] sm:$0xf] %vm764, %v721
        %787 = vst.msk [vmem:[%s271 + $0x58] sm:$0xf] %vm764, %v722
        %788 = vst.msk [vmem:[%s271 + $0x5c] sm:$0xf] %vm764, %v723
        %789 = vst.msk [vmem:[%s271 + $0x60] sm:$0xf] %vm764, %v724
        %790 = vst.msk [vmem:[%s271 + $0x64] sm:$0xf] %vm764, %v725
        %791 = vst.msk [vmem:[%s271 + $0x68] sm:$0xf] %vm764, %v726
        %792 = vst.msk [vmem:[%s271 + $0x6c] sm:$0xf] %vm764, %v727
        %793 = vst.msk [vmem:[%s271 + $0x70] sm:$0xf] %vm764, %v728
        %794 = vst.msk [vmem:[%s271 + $0x74] sm:$0xf] %vm764, %v729
        %795 = vst.msk [vmem:[%s271 + $0x78] sm:$0xf] %vm764, %v730
        %796 = vst.msk [vmem:[%s271 + $0x7c] sm:$0xf] %vm764, %v731
        %v797 = vld [vmem:[%s2] sm:$0x1]
        %v799 = vlaneseq
        %v800 = vshrl.u32 %v799, 7
        %v801 = vsub.s32 0, %v800
        %v802 = vrot.slane %v797, %v801
        %v804 = vmul.f32 %v478, %v802
        %v805 = vmul.f32 %v483, %v802
        %v806 = vmul.f32 %v488, %v802
        %v807 = vmul.f32 %v493, %v802
        %v808 = vmul.f32 %v498, %v802
        %v809 = vmul.f32 %v503, %v802
        %v810 = vmul.f32 %v508, %v802
        %v811 = vmul.f32 %v513, %v802
        %v812 = vmul.f32 %v518, %v802
        %v813 = vmul.f32 %v523, %v802
        %v814 = vmul.f32 %v528, %v802
        %v815 = vmul.f32 %v533, %v802
        %v816 = vmul.f32 %v538, %v802
        %v817 = vmul.f32 %v543, %v802
        %v818 = vmul.f32 %v548, %v802
        %v819 = vmul.f32 %v553, %v802
        %v820 = vmul.f32 %v558, %v802
        %v821 = vmul.f32 %v563, %v802
        %v822 = vmul.f32 %v568, %v802
        %v823 = vmul.f32 %v573, %v802
        %v824 = vmul.f32 %v578, %v802
        %v825 = vmul.f32 %v583, %v802
        %v826 = vmul.f32 %v588, %v802
        %v827 = vmul.f32 %v593, %v802
        %v828 = vmul.f32 %v598, %v802
        %v829 = vmul.f32 %v603, %v802
        %v830 = vmul.f32 %v608, %v802
        %v831 = vmul.f32 %v613, %v802
        %v832 = vmul.f32 %v618, %v802
        %v833 = vmul.f32 %v623, %v802
        %v834 = vmul.f32 %v628, %v802
        %v835 = vmul.f32 %v633, %v802
        %vm836 = vcmask 261120
        %v837 = vsel %vm836, %v804, 0.0
        %838 = vadd.xlane.f32.xlu0 %v837
        %v839 = vpop.xlane.xlu0 %838
        %v840 = vsel %vm836, %v805, 0.0
        %841 = vadd.xlane.f32.xlu0 %v840
        %v842 = vpop.xlane.xlu0 %841
        %v843 = vsel %vm836, %v806, 0.0
        %844 = vadd.xlane.f32.xlu0 %v843
        %v845 = vpop.xlane.xlu0 %844
        %v846 = vsel %vm836, %v807, 0.0
        %847 = vadd.xlane.f32.xlu0 %v846
        %v848 = vpop.xlane.xlu0 %847
        %v849 = vsel %vm836, %v808, 0.0
        %850 = vadd.xlane.f32.xlu0 %v849
        %v851 = vpop.xlane.xlu0 %850
        %v852 = vsel %vm836, %v809, 0.0
        %853 = vadd.xlane.f32.xlu0 %v852
        %v854 = vpop.xlane.xlu0 %853
        %v855 = vsel %vm836, %v810, 0.0
        %856 = vadd.xlane.f32.xlu0 %v855
        %v857 = vpop.xlane.xlu0 %856
        %v858 = vsel %vm836, %v811, 0.0
        %859 = vadd.xlane.f32.xlu0 %v858
        %v860 = vpop.xlane.xlu0 %859
        %v861 = vsel %vm836, %v812, 0.0
        %862 = vadd.xlane.f32.xlu0 %v861
        %v863 = vpop.xlane.xlu0 %862
        %v864 = vsel %vm836, %v813, 0.0
        %865 = vadd.xlane.f32.xlu0 %v864
        %v866 = vpop.xlane.xlu0 %865
        %v867 = vsel %vm836, %v814, 0.0
        %868 = vadd.xlane.f32.xlu0 %v867
        %v869 = vpop.xlane.xlu0 %868
        %v870 = vsel %vm836, %v815, 0.0
        %871 = vadd.xlane.f32.xlu0 %v870
        %v872 = vpop.xlane.xlu0 %871
        %v873 = vsel %vm836, %v816, 0.0
        %874 = vadd.xlane.f32.xlu0 %v873
        %v875 = vpop.xlane.xlu0 %874
        %v876 = vsel %vm836, %v817, 0.0
        %877 = vadd.xlane.f32.xlu0 %v876
        %v878 = vpop.xlane.xlu0 %877
        %v879 = vsel %vm836, %v818, 0.0
        %880 = vadd.xlane.f32.xlu0 %v879
        %v881 = vpop.xlane.xlu0 %880
        %v882 = vsel %vm836, %v819, 0.0
        %883 = vadd.xlane.f32.xlu0 %v882
        %v884 = vpop.xlane.xlu0 %883
        %v885 = vsel %vm836, %v820, 0.0
        %886 = vadd.xlane.f32.xlu0 %v885
        %v887 = vpop.xlane.xlu0 %886
        %v888 = vsel %vm836, %v821, 0.0
        %889 = vadd.xlane.f32.xlu0 %v888
        %v890 = vpop.xlane.xlu0 %889
        %v891 = vsel %vm836, %v822, 0.0
        %892 = vadd.xlane.f32.xlu0 %v891
        %v893 = vpop.xlane.xlu0 %892
        %v894 = vsel %vm836, %v823, 0.0
        %895 = vadd.xlane.f32.xlu0 %v894
        %v896 = vpop.xlane.xlu0 %895
        %v897 = vsel %vm836, %v824, 0.0
        %898 = vadd.xlane.f32.xlu0 %v897
        %v899 = vpop.xlane.xlu0 %898
        %v900 = vsel %vm836, %v825, 0.0
        %901 = vadd.xlane.f32.xlu0 %v900
        %v902 = vpop.xlane.xlu0 %901
        %v903 = vsel %vm836, %v826, 0.0
        %904 = vadd.xlane.f32.xlu0 %v903
        %v905 = vpop.xlane.xlu0 %904
        %v906 = vsel %vm836, %v827, 0.0
        %907 = vadd.xlane.f32.xlu0 %v906
        %v908 = vpop.xlane.xlu0 %907
        %v909 = vsel %vm836, %v828, 0.0
        %910 = vadd.xlane.f32.xlu0 %v909
        %v911 = vpop.xlane.xlu0 %910
        %v912 = vsel %vm836, %v829, 0.0
        %913 = vadd.xlane.f32.xlu0 %v912
        %v914 = vpop.xlane.xlu0 %913
        %v915 = vsel %vm836, %v830, 0.0
        %916 = vadd.xlane.f32.xlu0 %v915
        %v917 = vpop.xlane.xlu0 %916
        %v918 = vsel %vm836, %v831, 0.0
        %919 = vadd.xlane.f32.xlu0 %v918
        %v920 = vpop.xlane.xlu0 %919
        %v921 = vsel %vm836, %v832, 0.0
        %922 = vadd.xlane.f32.xlu0 %v921
        %v923 = vpop.xlane.xlu0 %922
        %v924 = vsel %vm836, %v833, 0.0
        %925 = vadd.xlane.f32.xlu0 %v924
        %v926 = vpop.xlane.xlu0 %925
        %v927 = vsel %vm836, %v834, 0.0
        %928 = vadd.xlane.f32.xlu0 %v927
        %v929 = vpop.xlane.xlu0 %928
        %v930 = vsel %vm836, %v835, 0.0
        %931 = vadd.xlane.f32.xlu0 %v930
        %v932 = vpop.xlane.xlu0 %931
        %vm933 = vcmask 7168
        %934 = vst.msk [vmem:[%s277] sm:$0xff] %vm933, %v839
        %935 = vst.msk [vmem:[%s277 + $0x8] sm:$0xff] %vm933, %v842
        %936 = vst.msk [vmem:[%s277 + $0x10] sm:$0xff] %vm933, %v845
        %937 = vst.msk [vmem:[%s277 + $0x18] sm:$0xff] %vm933, %v848
        %938 = vst.msk [vmem:[%s277 + $0x20] sm:$0xff] %vm933, %v851
        %939 = vst.msk [vmem:[%s277 + $0x28] sm:$0xff] %vm933, %v854
        %940 = vst.msk [vmem:[%s277 + $0x30] sm:$0xff] %vm933, %v857
        %941 = vst.msk [vmem:[%s277 + $0x38] sm:$0xff] %vm933, %v860
        %942 = vst.msk [vmem:[%s277 + $0x40] sm:$0xff] %vm933, %v863
        %943 = vst.msk [vmem:[%s277 + $0x48] sm:$0xff] %vm933, %v866
        %944 = vst.msk [vmem:[%s277 + $0x50] sm:$0xff] %vm933, %v869
        %945 = vst.msk [vmem:[%s277 + $0x58] sm:$0xff] %vm933, %v872
        %946 = vst.msk [vmem:[%s277 + $0x60] sm:$0xff] %vm933, %v875
        %947 = vst.msk [vmem:[%s277 + $0x68] sm:$0xff] %vm933, %v878
        %948 = vst.msk [vmem:[%s277 + $0x70] sm:$0xff] %vm933, %v881
        %949 = vst.msk [vmem:[%s277 + $0x78] sm:$0xff] %vm933, %v884
        %950 = vst.msk [vmem:[%s277 + $0x80] sm:$0xff] %vm933, %v887
        %951 = vst.msk [vmem:[%s277 + $0x88] sm:$0xff] %vm933, %v890
        %952 = vst.msk [vmem:[%s277 + $0x90] sm:$0xff] %vm933, %v893
        %953 = vst.msk [vmem:[%s277 + $0x98] sm:$0xff] %vm933, %v896
        %954 = vst.msk [vmem:[%s277 + $0xa0] sm:$0xff] %vm933, %v899
        %955 = vst.msk [vmem:[%s277 + $0xa8] sm:$0xff] %vm933, %v902
        %956 = vst.msk [vmem:[%s277 + $0xb0] sm:$0xff] %vm933, %v905
        %957 = vst.msk [vmem:[%s277 + $0xb8] sm:$0xff] %vm933, %v908
        %958 = vst.msk [vmem:[%s277 + $0xc0] sm:$0xff] %vm933, %v911
        %959 = vst.msk [vmem:[%s277 + $0xc8] sm:$0xff] %vm933, %v914
        %960 = vst.msk [vmem:[%s277 + $0xd0] sm:$0xff] %vm933, %v917
        %961 = vst.msk [vmem:[%s277 + $0xd8] sm:$0xff] %vm933, %v920
        %962 = vst.msk [vmem:[%s277 + $0xe0] sm:$0xff] %vm933, %v923
        %963 = vst.msk [vmem:[%s277 + $0xe8] sm:$0xff] %vm933, %v926
        %964 = vst.msk [vmem:[%s277 + $0xf0] sm:$0xff] %vm933, %v929
        %965 = vst.msk [vmem:[%s277 + $0xf8] sm:$0xff] %vm933, %v932
        %v966 = vld [vmem:[%s3] sm:$0x1]
        %v968 = vsel %vm836, %v966, 0
        %v971 = vsel %vm836, %v478, 0
        %v974 = vsel %vm836, %v483, 0
        %v977 = vsel %vm836, %v488, 0
        %v980 = vsel %vm836, %v493, 0
        %v983 = vsel %vm836, %v498, 0
        %v986 = vsel %vm836, %v503, 0
        %v989 = vsel %vm836, %v508, 0
        %v992 = vsel %vm836, %v513, 0
        %v995 = vsel %vm836, %v518, 0
        %v998 = vsel %vm836, %v523, 0
        %v1001 = vsel %vm836, %v528, 0
        %v1004 = vsel %vm836, %v533, 0
        %v1007 = vsel %vm836, %v538, 0
        %v1010 = vsel %vm836, %v543, 0
        %v1013 = vsel %vm836, %v548, 0
        %v1016 = vsel %vm836, %v553, 0
        %v1019 = vsel %vm836, %v558, 0
        %v1022 = vsel %vm836, %v563, 0
        %v1025 = vsel %vm836, %v568, 0
        %v1028 = vsel %vm836, %v573, 0
        %v1031 = vsel %vm836, %v578, 0
        %v1034 = vsel %vm836, %v583, 0
        %v1037 = vsel %vm836, %v588, 0
        %v1040 = vsel %vm836, %v593, 0
        %v1043 = vsel %vm836, %v598, 0
        %v1046 = vsel %vm836, %v603, 0
        %v1049 = vsel %vm836, %v608, 0
        %v1052 = vsel %vm836, %v613, 0
        %v1055 = vsel %vm836, %v618, 0
        %v1058 = vsel %vm836, %v623, 0
        %v1061 = vsel %vm836, %v628, 0
        %v1064 = vsel %vm836, %v633, 0
        %1066 = vmatprep.subr.mxu0 0.0
        %1067 = vmatpush1.xpose.msra.mxu0 %v971
        %1068 = vmatprep.subr.mxu0 0.0
        %1069 = vmatpush1.xpose.msra.mxu0 %v974
        %1070 = vmatprep.subr.mxu0 0.0
        %1071 = vmatpush1.xpose.msra.mxu0 %v977
        %1072 = vmatprep.subr.mxu0 0.0
        %1073 = vmatpush1.xpose.msra.mxu0 %v980
        %1074 = vmatprep.subr.mxu0 0.0
        %1075 = vmatpush1.xpose.msra.mxu0 %v983
        %1076 = vmatprep.subr.mxu0 0.0
        %1077 = vmatpush1.xpose.msra.mxu0 %v986
        %1078 = vmatprep.subr.mxu0 0.0
        %1079 = vmatpush1.xpose.msra.mxu0 %v989
        %1080 = vmatprep.subr.mxu0 0.0
        %1081 = vmatpush1.xpose.msra.mxu0 %v992
        %1082 = vmatprep.subr.mxu0 0.0
        %1083 = vmatpush1.xpose.msra.mxu0 %v995
        %1084 = vmatprep.subr.mxu0 0.0
        %1085 = vmatpush1.xpose.msra.mxu0 %v998
        %1086 = vmatprep.subr.mxu0 0.0
        %1087 = vmatpush1.xpose.msra.mxu0 %v1001
        %1088 = vmatprep.subr.mxu0 0.0
        %1089 = vmatpush1.xpose.msra.mxu0 %v1004
        %1090 = vmatprep.subr.mxu0 0.0
        %1091 = vmatpush1.xpose.msra.mxu0 %v1007
        %1092 = vmatprep.subr.mxu0 0.0
        %1093 = vmatpush1.xpose.msra.mxu0 %v1010
        %1094 = vmatprep.subr.mxu0 0.0
        %1095 = vmatpush1.xpose.msra.mxu0 %v1013
        %1096 = vmatprep.subr.mxu0 0.0
        %1097 = vmatpush1.xpose.msra.mxu0 %v1016
        %1098 = vmatprep.subr.mxu0 0.0
        %1099 = vmatpush1.xpose.msra.mxu0 %v1019
        %1100 = vmatprep.subr.mxu0 0.0
        %1101 = vmatpush1.xpose.msra.mxu0 %v1022
        %1102 = vmatprep.subr.mxu0 0.0
        %1103 = vmatpush1.xpose.msra.mxu0 %v1025
        %1104 = vmatprep.subr.mxu0 0.0
        %1105 = vmatpush1.xpose.msra.mxu0 %v1028
        %1106 = vmatprep.subr.mxu0 0.0
        %1107 = vmatpush1.xpose.msra.mxu0 %v1031
        %1108 = vmatprep.subr.mxu0 0.0
        %1109 = vmatpush1.xpose.msra.mxu0 %v1034
        %1110 = vmatprep.subr.mxu0 0.0
        %1111 = vmatpush1.xpose.msra.mxu0 %v1037
        %1112 = vmatprep.subr.mxu0 0.0
        %1113 = vmatpush1.xpose.msra.mxu0 %v1040
        %1114 = vmatprep.subr.mxu0 0.0
        %1115 = vmatpush1.xpose.msra.mxu0 %v1043
        %1116 = vmatprep.subr.mxu0 0.0
        %1117 = vmatpush1.xpose.msra.mxu0 %v1046
        %1118 = vmatprep.subr.mxu0 0.0
        %1119 = vmatpush1.xpose.msra.mxu0 %v1049
        %1120 = vmatprep.subr.mxu0 0.0
        %1121 = vmatpush1.xpose.msra.mxu0 %v1052
        %1122 = vmatprep.subr.mxu0 0.0
        %1123 = vmatpush1.xpose.msra.mxu0 %v1055
        %1124 = vmatprep.subr.mxu0 0.0
        %1125 = vmatpush1.xpose.msra.mxu0 %v1058
        %1126 = vmatprep.subr.mxu0 0.0
        %1127 = vmatpush1.xpose.msra.mxu0 %v1061
        %1128 = vmatprep.subr.mxu0 0.0
        %1129 = vmatpush1.xpose.msra.mxu0 %v1064
        %1130 = vmatprep.mubr.f32.mxu0 0.0
        %1131 = vmatmul.mubr.f32.gmra.mrb[0].mxu0 %v968
        %v1132 = vpop.f32.mrb[0].mxu0
        %v1133 = vadd.f32 0.0, %v1132
        %v1134 = vpop.f32.mrb[0].mxu0
        %v1135 = vadd.f32 0.0, %v1134
        %1136 = vdwg.mxu0
        %v1139 = vcombine.low %v1133, %v1135
        %v1141 = vunpack.c.l.s4 1966171168
        %v1142 = vunpack.c.0.s8 %v1141
        %v1143 = vlaneseq
        %v1144 = vshrl.u32 %v1143, 7
        %v1145 = vsub.s32 %v1142, %v1144
        %v1146 = vrot.slane %v1139, %v1145
        %v1148 = vunpack.c.l.s4 1966171168
        %v1149 = vunpack.c.0.s8 %v1148
        %v1150 = vlaneseq
        %v1151 = vshrl.u32 %v1150, 7
        %v1152 = vsub.s32 %v1149, %v1151
        %v1153 = vrot.slane %v1146, %v1152
        %v1155 = vlaneseq
        %vm1156 = vcmp.ge.s32.totalorder %v1155, 0
        %vm1157 = vcmp.lt.s32.totalorder %v1155, 256
        %vm1158 = vmand %vm1156, %vm1157
        %1159 = vst.msk [vmem:[%s260] sm:$0x3] %vm1158, %v1153
        %s1160 = smul.u32 32, %s21
        %p1161 = scmp.lt.s32.totalorder %s1160, 63
        %s1162 = scalar_select %p1161, %s1160, 63
        %s1163 = smul.addr %s1162, 4
        %s1164 = scalar_lea.vmem %s4, %s1163
        %s1165 = smul.u32 32, %s21
        %p1166 = scmp.lt.s32.totalorder %s1165, 63
        %s1167 = scalar_select %p1166, %s1165, 63
        %s1168 = smul.addr %s1167, 8
        %s1169 = scalar_lea.vmem %s5, %s1168
        %s1170 = sand.u32 %s170, 1
        %s1171 = scalar_lea.sflag [#allocation3], %s1170
        %s1172 = sand.u32 %s170, 1
        %s1173 = smul.addr %s1172, 2
        %s1174 = scalar_lea.vmem [#allocation2], %s1173
        // Predicated region
        $region37: #{tpu_custom_call.1} parent=35 // pred_check
          %p1175 = pneg %p128
        $region38: #{tpu_custom_call.1} parent=35 // pred_check_branch
          %1177 = sbr.rel (%p1175) target = $region40
        $region39: #{tpu_custom_call.1} parent=35 // pred_region
          %s1178 = smul.u32 32, %s21
        $region40: #{tpu_custom_call.1} parent=35 // pred_fallthru
          _
        // Predicated region
        $region41: #{tpu_custom_call.1} parent=35 // pred_check
          %p1179 = pneg %p154
        $region42: #{tpu_custom_call.1} parent=35 // pred_check_branch
          %1181 = sbr.rel (%p1179) target = $region44
        $region43: #{tpu_custom_call.1} parent=35 // pred_region
          %s1182 = smul.u32 32, %s21
        $region44: #{tpu_custom_call.1} parent=35 // pred_fallthru
          _
        // Predicated region
        $region45: #{tpu_custom_call.1} parent=35 // pred_check
          %p1183 = pneg %p180
        $region46: #{tpu_custom_call.1} parent=35 // pred_check_branch
          %1185 = sbr.rel (%p1183) target = $region48
        $region47: #{tpu_custom_call.1} parent=35 // pred_region
          %s1186 = smul.u32 2, %s21
          %s1188 = ssub.s32 32, 32
          %1189 = vsyncadd %s1171, %s1188
          %s1190 = smul.addr %s1186, 16
          %s1191 = scalar_lea.hbm %s6, %s1190
          %s1193 = sshll.u32 %s1174, 4
          %s1194 = int_to_ptr.vmem [resolvable:$true] %s1193
          %1196 = dma.vmem_to_hbm [thread:$0]  %s1194, 32, %s1191, %s1171
        $region48: #{tpu_custom_call.1} parent=35 // pred_fallthru
          _
      $region36: #{tpu_custom_call.1} parent=5 // pred_fallthru
        _
      %p1197 = scmp.le.s32.totalorder 2, %s16
      // Predicated region
      $region49: #{tpu_custom_call.1} parent=5 // pred_check
        %p1198 = pneg %p1197
      $region50: #{tpu_custom_call.1} parent=5 // pred_check_branch
        %1200 = sbr.rel (%p1198) target = $region52
      $region51: #{tpu_custom_call.1} parent=5 // pred_region
        %s1201 = ssub.s32 %s16, 2
        // Predicated region
        $region53: #{tpu_custom_call.1} parent=51 // pred_check
          %p1202 = pneg %p134
        $region54: #{tpu_custom_call.1} parent=51 // pred_check_branch
          %1204 = sbr.rel (%p1202) target = $region56
        $region55: #{tpu_custom_call.1} parent=51 // pred_region
          %s1205 = smul.u32 32, %s22
          %p1206 = scmp.lt.s32.totalorder %s1205, 63
          %s1207 = scalar_select %p1206, %s1205, 63
          %s1208 = smul.addr %s1207, 4
          %s1209 = scalar_lea.vmem %s4, %s1208
        $region56: #{tpu_custom_call.1} parent=51 // pred_fallthru
          _
        // Predicated region
        $region57: #{tpu_custom_call.1} parent=51 // pred_check
          %p1210 = pneg %p160
        $region58: #{tpu_custom_call.1} parent=51 // pred_check_branch
          %1212 = sbr.rel (%p1210) target = $region60
        $region59: #{tpu_custom_call.1} parent=51 // pred_region
          %s1213 = smul.u32 32, %s22
          %p1214 = scmp.lt.s32.totalorder %s1213, 63
          %s1215 = scalar_select %p1214, %s1213, 63
          %s1216 = smul.addr %s1215, 8
          %s1217 = scalar_lea.vmem %s5, %s1216
        $region60: #{tpu_custom_call.1} parent=51 // pred_fallthru
          _
        // Predicated region
        $region61: #{tpu_custom_call.1} parent=51 // pred_check
          %p1218 = pneg %p186
        $region62: #{tpu_custom_call.1} parent=51 // pred_check_branch
          %1220 = sbr.rel (%p1218) target = $region64
        $region63: #{tpu_custom_call.1} parent=51 // pred_region
          %s1221 = sand.u32 %s171, 1
          %s1222 = scalar_lea.sflag [#allocation3], %s1221
          %s1223 = sand.u32 %s171, 1
          %s1224 = smul.addr %s1223, 2
          %s1225 = scalar_lea.vmem [#allocation2], %s1224
          %1226 = dma.done %s1222, 32
        $region64: #{tpu_custom_call.1} parent=51 // pred_fallthru
          _
      $region52: #{tpu_custom_call.1} parent=5 // pred_fallthru
        _
    $region6: #{tpu_custom_call.1} parent=1 // loop_footer
      %s20 = sadd.s32 1, %s16
    $region7: #{tpu_custom_call.1} parent=1 // loop_footer_branch
      %15 = sbr.rel target = $region3
    $region8: #{tpu_custom_call.1} parent=1 // loop_exit
      _
    %1227 = vsyncpa [#allocation3], 1
    %s1228 = scalar_lea.sflag [#allocation3], 1
    %1229 = vsyncpa %s1228, 1

</llo_original>
